<compile_context>
chip_gen: v5e
topology: v5e:2x2
jax: 0.10.0
libtpu: 0.0.40
codegen_flags: <defaults>
</compile_context>

<pallas_src>
import functools

import jax
import jax.numpy as jnp
from jax.experimental import pallas as pl
from jax.experimental.pallas import tpu as pltpu

CONTEXT_SIZE = 5
EMBEDDING_DIM = 50
HIDDEN = 128
FEAT = CONTEXT_SIZE * EMBEDDING_DIM      # 250
FEAT_PAD = 256                           # K padded to MXU/sublane alignment
NEG_BIG = -1e30                          # masks padded logit columns (f32 only)


def _mlp_logsoftmax_kernel(x_ref, w1_ref, b1_ref, w2_ref, b2_ref, out_ref):
    # x: (tile_b, FEAT_PAD) bf16 summed embeddings (zero-padded K columns).
    # linear1 + ReLU.  bf16 MXU operands, f32 accumulation; bias/ReLU in f32.
    h = jnp.dot(x_ref[...], w1_ref[...], preferred_element_type=jnp.float32)
    h = jnp.maximum(h + b1_ref[...], 0.0)                       # (tile_b, 128)

    # linear2.  Padded tag columns carry a -1e30 f32 bias -> effectively masked.
    logits = jnp.dot(h.astype(jnp.bfloat16), w2_ref[...],
                     preferred_element_type=jnp.float32)
    logits = logits + b2_ref[...]                               # (tile_b, T_PAD)

    # Numerically stable log_softmax along dim=1 (padded cols contribute ~0),
    # all in f32; only the final store narrows to the output dtype.
    m = jnp.max(logits, axis=1, keepdims=True)
    shifted = logits - m
    lse = jnp.log(jnp.sum(jnp.exp(shifted), axis=1, keepdims=True))
    out_ref[...] = (shifted - lse).astype(out_ref.dtype)


def prepare_params(params):
    """One-time parameter prep (pad + bf16 cast), hoisted out of the forward."""
    w1, b1 = params["w1"], params["b1"]          # (FEAT, 128), (1, 128)
    w2, b2 = params["w2"], params["b2"]          # (128, T),    (1, T)
    T = w2.shape[1]
    t_pad = pl.cdiv(T, 128) * 128
    w1_p = jnp.zeros((FEAT_PAD, HIDDEN), jnp.bfloat16).at[:FEAT, :].set(
        w1.astype(jnp.bfloat16))
    w2_p = jnp.zeros((HIDDEN, t_pad), jnp.bfloat16).at[:, :T].set(
        w2.astype(jnp.bfloat16))
    b1_p = b1.astype(jnp.float32).reshape(1, HIDDEN)
    # Padded tag columns get a huge negative f32 bias so they never win the
    # max nor contribute to the softmax sum.  (Never route NEG_BIG via bf16.)
    b2_p = jnp.full((1, t_pad), NEG_BIG, jnp.float32).at[:, :T].set(
        b2.astype(jnp.float32).reshape(1, T))
    return {
        "embeddings": params["embeddings"],
        "prefix_embedding": params["prefix_embedding"],
        "suffix_embedding": params["suffix_embedding"],
        "w1_p": w1_p, "b1_p": b1_p, "w2_p": w2_p, "b2_p": b2_p,
    }


@functools.partial(jax.jit, static_argnames=("tags_size", "tile_b"))
def ngram_forward(inputs, p_inputs, s_inputs, prepped, *, tags_size, tile_b=512):
    """inputs / p_inputs / s_inputs: int32 (CONTEXT_SIZE, B) index tensors."""
    emb_w = prepped["embeddings"]          # (vocab_size+1, D)
    pre_w = prepped["prefix_embedding"]    # (prefix_size+1, D)
    suf_w = prepped["suffix_embedding"]    # (suffix_size+1, D)
    w1_p, b1_p = prepped["w1_p"], prepped["b1_p"]
    w2_p, b2_p = prepped["w2_p"], prepped["b2_p"]

    B = inputs.shape[1]
    t_pad = w2_p.shape[1]

    # Batch tile: primary tuning knob.  Keep it a multiple of 16 (bf16
    # sublane packing) and clamp to the padded batch so small batches don't
    # over-pad; at real batch sizes this gives >=4-8 grid steps per core.
    tile_eff = max(16, (min(tile_b, pl.cdiv(B, 16) * 16) // 16) * 16)
    b_pad = pl.cdiv(B, tile_eff) * tile_eff

    # Fused embedding gather + sum in f32 (plain-JAX glue), matching
    # embeddings(inputs.t()).reshape(B, C*D) + prefix(...) + suffix(...),
    # then a single cast to bf16 (the MXU operand dtype) and one fused pad.
    x = (emb_w[inputs.T] + pre_w[p_inputs.T] + suf_w[s_inputs.T])
    x = x.reshape(B, FEAT).astype(jnp.bfloat16)
    x_p = jnp.pad(x, ((0, b_pad - B), (0, FEAT_PAD - FEAT)))

    # Only override scoped VMEM if the double-buffered footprint could exceed
    # v5e's 16 MiB default (it doesn't for tile_b <= ~4096 with bf16 streams).
    step_bytes = 2 * tile_eff * (FEAT_PAD + t_pad) * 2                 # x + out
    step_bytes += 2 * ((FEAT_PAD * HIDDEN + HIDDEN * t_pad) * 2        # weights
                       + (HIDDEN + t_pad) * 4)                         # biases
    vmem_limit = int(step_bytes * 1.5) if step_bytes > 14 * (1 << 20) else None

    out = pl.pallas_call(
        _mlp_logsoftmax_kernel,
        out_shape=jax.ShapeDtypeStruct((b_pad, t_pad), jnp.bfloat16),
        grid=(b_pad // tile_eff,),
        in_specs=[
            pl.BlockSpec((tile_eff, FEAT_PAD), lambda i: (i, 0)),   # x tiles
            pl.BlockSpec((FEAT_PAD, HIDDEN), lambda i: (0, 0)),     # w1 resident
            pl.BlockSpec((1, HIDDEN), lambda i: (0, 0)),            # b1 resident
            pl.BlockSpec((HIDDEN, t_pad), lambda i: (0, 0)),        # w2 resident
            pl.BlockSpec((1, t_pad), lambda i: (0, 0)),             # b2 resident
        ],
        out_specs=pl.BlockSpec((tile_eff, t_pad), lambda i: (i, 0)),
        compiler_params=pltpu.CompilerParams(
            dimension_semantics=("parallel",),
            vmem_limit_bytes=vmem_limit),
    )(x_p, w1_p, b1_p, w2_p, b2_p)

    return out[:B, :tags_size]


def init_params(key, vocab_size, embedding_dim, context_size, tags_size,
                prefix_size, suffix_size):
    keys = jax.random.split(key, 7)
    in1 = context_size * embedding_dim
    lim1 = 1.0 / jnp.sqrt(in1)
    lim2 = 1.0 / jnp.sqrt(128.0)
    return {
        "embeddings": jax.random.normal(keys[0], (vocab_size + 1, embedding_dim), jnp.float32),
        "prefix_embedding": jax.random.normal(keys[1], (prefix_size + 1, embedding_dim), jnp.float32),
        "suffix_embedding": jax.random.normal(keys[2], (suffix_size + 1, embedding_dim), jnp.float32),
        "w1": jax.random.uniform(keys[3], (in1, 128), jnp.float32, -lim1, lim1),
        "b1": jax.random.uniform(keys[4], (1, 128), jnp.float32, -lim1, lim1),
        "w2": jax.random.uniform(keys[5], (128, tags_size), jnp.float32, -lim2, lim2),
        "b2": jax.random.uniform(keys[6], (1, tags_size), jnp.float32, -lim2, lim2),
    }


def ref_forward(inputs, p_inputs, s_inputs, params):
    """Pure-JAX f32 reference of the PyTorch forward (for correctness check)."""
    B = inputs.shape[1]
    x = (params["embeddings"][inputs.T] + params["prefix_embedding"][p_inputs.T]
         + params["suffix_embedding"][s_inputs.T]).reshape(B, FEAT)
    h = jnp.maximum(x @ params["w1"] + params["b1"], 0.0)
    logits = h @ params["w2"] + params["b2"]
    return jax.nn.log_softmax(logits, axis=1)


if __name__ == "__main__":
    VOCAB_SIZE, PREFIX_SIZE, SUFFIX_SIZE = 100, 30, 30
    TAGS_SIZE = 16
    B = 256   # small demo batch; tile_b=128 below exercises a 2-step grid
              # (production default tile_b=512 at real batch sizes).

    key = jax.random.PRNGKey(0)
    pkey, k1, k2, k3 = jax.random.split(key, 4)
    params = init_params(pkey, VOCAB_SIZE, EMBEDDING_DIM, CONTEXT_SIZE,
                         TAGS_SIZE, PREFIX_SIZE, SUFFIX_SIZE)
    prepped = prepare_params(params)   # one-time pad + bf16 cast

    # Index tensors are (CONTEXT_SIZE, B), transposed inside forward (inputs.t()).
    inputs = jax.random.randint(k1, (CONTEXT_SIZE, B), 0, VOCAB_SIZE + 1, jnp.int32)
    p_inputs = jax.random.randint(k2, (CONTEXT_SIZE, B), 0, PREFIX_SIZE + 1, jnp.int32)
    s_inputs = jax.random.randint(k3, (CONTEXT_SIZE, B), 0, SUFFIX_SIZE + 1, jnp.int32)

    log_probs = ngram_forward(inputs, p_inputs, s_inputs, prepped,
                              tags_size=TAGS_SIZE, tile_b=128)
    jax.block_until_ready(log_probs)

    assert log_probs.shape == (B, TAGS_SIZE)
    lp = log_probs.astype(jnp.float32)
    # Each row must be a valid log-distribution (prob-space row sum ~1);
    # tolerance covers the bf16 output narrowing.
    assert bool(jnp.allclose(jnp.exp(lp).sum(axis=1), 1.0, atol=2e-2))
    # Cross-check vs. the f32 reference (tolerance covers bf16 MXU operands
    # and the bf16 output store).
    ref = ref_forward(inputs, p_inputs, s_inputs, params)
    assert bool(jnp.allclose(lp, ref, atol=3e-2, rtol=3e-2))

    print("KERNEL_OK")
</pallas_src>

<mosaic_0001>
module attributes {stable_mosaic.version = 11 : i64} {
  func.func @_mlp_logsoftmax_kernel(%arg0: i32, %arg1: memref<128x256xbf16, #tpu.memory_space<vmem>>, %arg2: memref<256x128xbf16, #tpu.memory_space<vmem>>, %arg3: memref<1x128xf32, #tpu.memory_space<vmem>>, %arg4: memref<128x128xbf16, #tpu.memory_space<vmem>>, %arg5: memref<1x128xf32, #tpu.memory_space<vmem>>, %arg6: memref<128x128xbf16, #tpu.memory_space<vmem>>) attributes {dimension_semantics = [#tpu.dimension_semantics<parallel>], iteration_bounds = array<i64: 2>, scalar_prefetch = 0 : i64, scratch_operands = 0 : i64, tpu.core_type = #tpu.core_type<tc>, window_params = [{transform_indices = @transform_0, window_bounds = array<i64: 128, 256>}, {pipeline_mode = #tpu.pipeline_mode<synchronous>, transform_indices = @transform_1, window_bounds = array<i64: 256, 128>}, {pipeline_mode = #tpu.pipeline_mode<synchronous>, transform_indices = @transform_2, window_bounds = array<i64: 1, 128>}, {pipeline_mode = #tpu.pipeline_mode<synchronous>, transform_indices = @transform_3, window_bounds = array<i64: 128, 128>}, {pipeline_mode = #tpu.pipeline_mode<synchronous>, transform_indices = @transform_4, window_bounds = array<i64: 1, 128>}, {transform_indices = @transform_5, window_bounds = array<i64: 128, 128>}]} {
    %c0 = arith.constant 0 : index
    %c0_0 = arith.constant 0 : index
    %0 = vector.load %arg1[%c0, %c0_0] : memref<128x256xbf16, #tpu.memory_space<vmem>>, vector<128x256xbf16>
    %c0_1 = arith.constant 0 : index
    %c0_2 = arith.constant 0 : index
    %1 = vector.load %arg2[%c0_1, %c0_2] : memref<256x128xbf16, #tpu.memory_space<vmem>>, vector<256x128xbf16>
    %cst = arith.constant dense<0.000000e+00> : vector<128x128xf32>
    %2 = tpu.matmul %0, %1, %cst {dimension_numbers = #tpu.dot_dimension_numbers<[1], [0], [0], [1], [0, 0, 1, 1], [], []>} : vector<128x256xbf16>, vector<256x128xbf16>, vector<128x128xf32> -> vector<128x128xf32>
    %c0_3 = arith.constant 0 : index
    %c0_4 = arith.constant 0 : index
    %3 = vector.load %arg3[%c0_3, %c0_4] : memref<1x128xf32, #tpu.memory_space<vmem>>, vector<1x128xf32>
    %4 = vector.broadcast %3 : vector<1x128xf32> to vector<128x128xf32>
    %5 = arith.addf %2, %4 : vector<128x128xf32>
    %cst_5 = arith.constant 0.000000e+00 : f32
    %6 = vector.broadcast %cst_5 : f32 to vector<128x128xf32>
    %7 = arith.maximumf %5, %6 : vector<128x128xf32>
    %8 = arith.truncf %7 : vector<128x128xf32> to vector<128x128xbf16>
    %c0_6 = arith.constant 0 : index
    %c0_7 = arith.constant 0 : index
    %9 = vector.load %arg4[%c0_6, %c0_7] : memref<128x128xbf16, #tpu.memory_space<vmem>>, vector<128x128xbf16>
    %cst_8 = arith.constant dense<0.000000e+00> : vector<128x128xf32>
    %10 = tpu.matmul %8, %9, %cst_8 {dimension_numbers = #tpu.dot_dimension_numbers<[1], [0], [0], [1], [0, 0, 1, 1], [], []>} : vector<128x128xbf16>, vector<128x128xbf16>, vector<128x128xf32> -> vector<128x128xf32>
    %c0_9 = arith.constant 0 : index
    %c0_10 = arith.constant 0 : index
    %11 = vector.load %arg5[%c0_9, %c0_10] : memref<1x128xf32, #tpu.memory_space<vmem>>, vector<1x128xf32>
    %12 = vector.broadcast %11 : vector<1x128xf32> to vector<128x128xf32>
    %13 = arith.addf %10, %12 : vector<128x128xf32>
    %cst_11 = arith.constant dense<0xFF800000> : vector<128xf32>
    %14 = vector.multi_reduction <maximumf>, %13, %cst_11 [1] : vector<128x128xf32> to vector<128xf32>
    %15 = vector.shape_cast %14 : vector<128xf32> to vector<128x1xf32>
    %16 = vector.broadcast %15 : vector<128x1xf32> to vector<128x128xf32>
    %17 = arith.subf %13, %16 : vector<128x128xf32>
    %18 = math.exp %17 : vector<128x128xf32>
    %cst_12 = arith.constant dense<0.000000e+00> : vector<128xf32>
    %19 = vector.multi_reduction <add>, %18, %cst_12 [1] : vector<128x128xf32> to vector<128xf32>
    %20 = vector.shape_cast %19 : vector<128xf32> to vector<128x1xf32>
    %21 = math.log %20 : vector<128x1xf32>
    %22 = vector.broadcast %21 : vector<128x1xf32> to vector<128x128xf32>
    %23 = arith.subf %17, %22 : vector<128x128xf32>
    %24 = arith.truncf %23 : vector<128x128xf32> to vector<128x128xbf16>
    %c0_13 = arith.constant 0 : index
    %c0_14 = arith.constant 0 : index
    %25 = vector.load %arg6[%c0_13, %c0_14] : memref<128x128xbf16, #tpu.memory_space<vmem>>, vector<128x128xbf16>
    tpu.vector_store %arg6[%c0_13, %c0_14], %24 {strides = array<i32>} : memref<128x128xbf16, #tpu.memory_space<vmem>>, vector<128x128xbf16>,
    return
  }
  func.func @transform_0(%arg0: i32) -> (i32, i32) {
    %c0_i32 = arith.constant 0 : i32
    %c0_i32_0 = arith.constant 0 : i32
    return %arg0, %c0_i32 : i32, i32
  }
  func.func @transform_1(%arg0: i32) -> (i32, i32) {
    %c0_i32 = arith.constant 0 : i32
    %c0_i32_0 = arith.constant 0 : i32
    %c0_i32_1 = arith.constant 0 : i32
    return %c0_i32, %c0_i32_0 : i32, i32
  }
  func.func @transform_2(%arg0: i32) -> (i32, i32) {
    %c0_i32 = arith.constant 0 : i32
    %c0_i32_0 = arith.constant 0 : i32
    %c0_i32_1 = arith.constant 0 : i32
    return %c0_i32, %c0_i32_0 : i32, i32
  }
  func.func @transform_3(%arg0: i32) -> (i32, i32) {
    %c0_i32 = arith.constant 0 : i32
    %c0_i32_0 = arith.constant 0 : i32
    %c0_i32_1 = arith.constant 0 : i32
    return %c0_i32, %c0_i32_0 : i32, i32
  }
  func.func @transform_4(%arg0: i32) -> (i32, i32) {
    %c0_i32 = arith.constant 0 : i32
    %c0_i32_0 = arith.constant 0 : i32
    %c0_i32_1 = arith.constant 0 : i32
    return %c0_i32, %c0_i32_0 : i32, i32
  }
  func.func @transform_5(%arg0: i32) -> (i32, i32) {
    %c0_i32 = arith.constant 0 : i32
    %c0_i32_0 = arith.constant 0 : i32
    return %arg0, %c0_i32 : i32, i32
  }
}

</mosaic_0001>

<llo_original>
// kernel: ngram_forward.1
$region0: #{ngram_forward.1}
  #allocation0 [shape = 'u32[]', space=smem, size = 0x4, offset = 0x4, fixed_abs, tag = 'smem constant byte address 0x4 - core index']
  #allocation1 [shape = 'u32[72,128]{1,0:T(1,128)}', space=vmem, size = 0x9000, scoped, tag = 'internal scratch']
  %s0 = inlined_call_operand.vmem [shape: bf16[256,256], index: 0, kind: input, shape index: {}]
  %s1 = inlined_call_operand.vmem [shape: bf16[256,128], index: 1, kind: input, shape index: {}]
  %s2 = inlined_call_operand.vmem [shape: f32[1,128], index: 2, kind: input, shape index: {}]
  %s3 = inlined_call_operand.vmem [shape: bf16[128,128], index: 3, kind: input, shape index: {}]
  %s4 = inlined_call_operand.vmem [shape: f32[1,128], index: 4, kind: input, shape index: {}]
  %s5 = inlined_call_operand.vmem [shape: bf16[256,128], index: 5, kind: output, shape index: {}]
  %s6 = sld [smem:[#allocation0]]
  $region53: #{ngram_forward.1} parent=0
    _
  %s8 = ssub.s32 1, %s6
  %s9 = scalar_select 0, %s8, %s6
  loop: start=0, step=1, limit=4
  $region2: #{ngram_forward.1} parent=0 // loop_pre_header
    _
  $region3: #{ngram_forward.1} parent=0 // loop_header
    %s11 = sphi 0, %s15
    %p12 = scmp.ge.s32.totalorder %s11, 4
    %s21 = sphi 0, %s23
    %s24 = sphi 0, %s21
    %s25 = sphi 0, %s24
    %s41 = sphi 0, %s25
    %s45 = sphi 0, %s45
    %s47 = sphi 0, %s45
    %s48 = sphi 0, %s47
    %s62 = sphi 0, %s48
    %s66 = sphi 0, %s66
    %s68 = sphi 0, %s66
    %s69 = sphi 0, %s68
    %s83 = sphi 0, %s69
    %s87 = sphi 0, %s87
    %s89 = sphi 0, %s87
    %s90 = sphi 0, %s89
    %s104 = sphi 0, %s90
    %s108 = sphi 0, %s108
    %s110 = sphi 0, %s108
    %s111 = sphi 0, %s110
    %s125 = sphi 0, %s111
    %s131 = sphi 0, %s133
    %s134 = sphi 0, %s131
    %s135 = sphi 0, %s134
    %s151 = sphi 0, %s135
  $region4: #{ngram_forward.1} parent=0 // loop_header_branch
    %14 = sbr.rel (%p12) target = $region8
  $region5: #{ngram_forward.1} parent=0 // loop_body
    %s16 = ssub.s32 %s11, 1
    %s17 = ssub.s32 %s11, 2
    %s18 = sadd.s32 %s11, 1
    %s19 = ssub.s32 %s11, %s18
    %p20 = scmp.eq.s32.totalorder %s19, 0
    %s22 = sadd.s32 %s21, 1
    %s23 = scalar_select %p20, %s21, %s22
    %p26 = pneg %p20
    %p27 = scmp.eq.s32.totalorder %s11, 1
    %p28 = por %p26, %p27
    %p29 = scmp.ne.s32.totalorder %s21, %s24
    %p30 = scmp.eq.s32.totalorder %s11, 0
    %p31 = por %p29, %p30
    %p32 = scmp.ne.s32.totalorder %s21, %s24
    %p33 = scmp.eq.s32.totalorder %s16, 1
    %p34 = por %p32, %p33
    %p35 = scmp.ne.s32.totalorder %s24, %s25
    %p36 = scmp.eq.s32.totalorder %s16, 0
    %p37 = por %p35, %p36
    %p38 = scmp.ne.s32.totalorder %s24, %s25
    %p39 = scmp.eq.s32.totalorder %s17, 1
    %p40 = por %p38, %p39
    %p42 = scmp.ne.s32.totalorder %s25, %s41
    %p43 = scmp.eq.s32.totalorder %s17, 0
    %p44 = por %p42, %p43
    %s46 = sadd.s32 %s45, 1
    %p49 = scmp.eq.s32.totalorder %s11, 1
    %p50 = scmp.ne.s32.totalorder %s45, %s47
    %p51 = scmp.eq.s32.totalorder %s11, 0
    %p52 = por %p50, %p51
    %p53 = scmp.ne.s32.totalorder %s45, %s47
    %p54 = scmp.eq.s32.totalorder %s16, 1
    %p55 = por %p53, %p54
    %p56 = scmp.ne.s32.totalorder %s47, %s48
    %p57 = scmp.eq.s32.totalorder %s16, 0
    %p58 = por %p56, %p57
    %p59 = scmp.ne.s32.totalorder %s47, %s48
    %p60 = scmp.eq.s32.totalorder %s17, 1
    %p61 = por %p59, %p60
    %p63 = scmp.ne.s32.totalorder %s48, %s62
    %p64 = scmp.eq.s32.totalorder %s17, 0
    %p65 = por %p63, %p64
    %s67 = sadd.s32 %s66, 1
    %p70 = scmp.eq.s32.totalorder %s11, 1
    %p71 = scmp.ne.s32.totalorder %s66, %s68
    %p72 = scmp.eq.s32.totalorder %s11, 0
    %p73 = por %p71, %p72
    %p74 = scmp.ne.s32.totalorder %s66, %s68
    %p75 = scmp.eq.s32.totalorder %s16, 1
    %p76 = por %p74, %p75
    %p77 = scmp.ne.s32.totalorder %s68, %s69
    %p78 = scmp.eq.s32.totalorder %s16, 0
    %p79 = por %p77, %p78
    %p80 = scmp.ne.s32.totalorder %s68, %s69
    %p81 = scmp.eq.s32.totalorder %s17, 1
    %p82 = por %p80, %p81
    %p84 = scmp.ne.s32.totalorder %s69, %s83
    %p85 = scmp.eq.s32.totalorder %s17, 0
    %p86 = por %p84, %p85
    %s88 = sadd.s32 %s87, 1
    %p91 = scmp.eq.s32.totalorder %s11, 1
    %p92 = scmp.ne.s32.totalorder %s87, %s89
    %p93 = scmp.eq.s32.totalorder %s11, 0
    %p94 = por %p92, %p93
    %p95 = scmp.ne.s32.totalorder %s87, %s89
    %p96 = scmp.eq.s32.totalorder %s16, 1
    %p97 = por %p95, %p96
    %p98 = scmp.ne.s32.totalorder %s89, %s90
    %p99 = scmp.eq.s32.totalorder %s16, 0
    %p100 = por %p98, %p99
    %p101 = scmp.ne.s32.totalorder %s89, %s90
    %p102 = scmp.eq.s32.totalorder %s17, 1
    %p103 = por %p101, %p102
    %p105 = scmp.ne.s32.totalorder %s90, %s104
    %p106 = scmp.eq.s32.totalorder %s17, 0
    %p107 = por %p105, %p106
    %s109 = sadd.s32 %s108, 1
    %p112 = scmp.eq.s32.totalorder %s11, 1
    %p113 = scmp.ne.s32.totalorder %s108, %s110
    %p114 = scmp.eq.s32.totalorder %s11, 0
    %p115 = por %p113, %p114
    %p116 = scmp.ne.s32.totalorder %s108, %s110
    %p117 = scmp.eq.s32.totalorder %s16, 1
    %p118 = por %p116, %p117
    %p119 = scmp.ne.s32.totalorder %s110, %s111
    %p120 = scmp.eq.s32.totalorder %s16, 0
    %p121 = por %p119, %p120
    %p122 = scmp.ne.s32.totalorder %s110, %s111
    %p123 = scmp.eq.s32.totalorder %s17, 1
    %p124 = por %p122, %p123
    %p126 = scmp.ne.s32.totalorder %s111, %s125
    %p127 = scmp.eq.s32.totalorder %s17, 0
    %p128 = por %p126, %p127
    %s129 = ssub.s32 %s11, %s18
    %p130 = scmp.eq.s32.totalorder %s129, 0
    %s132 = sadd.s32 %s131, 1
    %s133 = scalar_select %p130, %s131, %s132
    %p136 = pneg %p130
    %p137 = scmp.eq.s32.totalorder %s11, 1
    %p138 = por %p136, %p137
    %p139 = scmp.ne.s32.totalorder %s131, %s134
    %p140 = scmp.eq.s32.totalorder %s11, 0
    %p141 = por %p139, %p140
    %p142 = scmp.ne.s32.totalorder %s131, %s134
    %p143 = scmp.eq.s32.totalorder %s16, 1
    %p144 = por %p142, %p143
    %p145 = scmp.ne.s32.totalorder %s134, %s135
    %p146 = scmp.eq.s32.totalorder %s16, 0
    %p147 = por %p145, %p146
    %p148 = scmp.ne.s32.totalorder %s134, %s135
    %p149 = scmp.eq.s32.totalorder %s17, 1
    %p150 = por %p148, %p149
    %p152 = scmp.ne.s32.totalorder %s135, %s151
    %p153 = scmp.eq.s32.totalorder %s17, 0
    %p154 = por %p152, %p153
    %p155 = scmp.le.s32.totalorder 1, %s11
    %p156 = scmp.lt.s32.totalorder %s11, 3
    %p157 = pnand %p155, %p156
    %p158 = pneg %p157
    // Predicated region
    $region9: #{ngram_forward.1} parent=5 // pred_check
      _
    $region10: #{ngram_forward.1} parent=5 // pred_check_branch
      %160 = sbr.rel (%p157) target = $region12
    $region11: #{ngram_forward.1} parent=5 // pred_region
      %s161 = ssub.s32 %s11, 1
      // Predicated region
      $region13: #{ngram_forward.1} parent=11 // pred_check
        %p162 = pneg %p58
      $region14: #{ngram_forward.1} parent=11 // pred_check_branch
        %164 = sbr.rel (%p162) target = $region16
      $region15: #{ngram_forward.1} parent=11 // pred_region
        _
      $region16: #{ngram_forward.1} parent=11 // pred_fallthru
        _
      // Predicated region
      $region17: #{ngram_forward.1} parent=11 // pred_check
        %p165 = pneg %p79
      $region18: #{ngram_forward.1} parent=11 // pred_check_branch
        %167 = sbr.rel (%p165) target = $region20
      $region19: #{ngram_forward.1} parent=11 // pred_region
        _
      $region20: #{ngram_forward.1} parent=11 // pred_fallthru
        _
      // Predicated region
      $region21: #{ngram_forward.1} parent=11 // pred_check
        %p168 = pneg %p100
      $region22: #{ngram_forward.1} parent=11 // pred_check_branch
        %170 = sbr.rel (%p168) target = $region24
      $region23: #{ngram_forward.1} parent=11 // pred_region
        _
      $region24: #{ngram_forward.1} parent=11 // pred_fallthru
        _
      // Predicated region
      $region25: #{ngram_forward.1} parent=11 // pred_check
        %p171 = pneg %p121
      $region26: #{ngram_forward.1} parent=11 // pred_check_branch
        %173 = sbr.rel (%p171) target = $region28
      $region27: #{ngram_forward.1} parent=11 // pred_region
        _
      $region28: #{ngram_forward.1} parent=11 // pred_fallthru
        _
    $region12: #{ngram_forward.1} parent=5 // pred_fallthru
      _
    %p174 = scmp.lt.s32.totalorder %s11, 2
    // Predicated region
    $region29: #{ngram_forward.1} parent=5 // pred_check
      %p175 = pneg %p174
    $region30: #{ngram_forward.1} parent=5 // pred_check_branch
      %177 = sbr.rel (%p175) target = $region32
    $region31: #{ngram_forward.1} parent=5 // pred_region
      // Predicated region
      $region33: #{ngram_forward.1} parent=31 // pred_check
        %p178 = pneg %p31
      $region34: #{ngram_forward.1} parent=31 // pred_check_branch
        %180 = sbr.rel (%p178) target = $region36
      $region35: #{ngram_forward.1} parent=31 // pred_region
        %s181 = smul.u32 16, %s11
        %p182 = scmp.lt.s32.totalorder %s181, 31
        %s183 = scalar_select %p182, %s181, 31
        %s184 = smul.addr %s183, 2
        %s185 = smul.addr %s184, 4
        %s186 = scalar_lea.vmem %s0, %s185
        %s187 = smul.u32 16, %s11
      $region36: #{ngram_forward.1} parent=31 // pred_fallthru
        _
    $region32: #{ngram_forward.1} parent=5 // pred_fallthru
      _
    %p188 = scmp.le.s32.totalorder 1, %s11
    %p189 = scmp.lt.s32.totalorder %s11, 3
    %p190 = pnand %p188, %p189
    %p191 = pneg %p190
    // Predicated region
    $region37: #{ngram_forward.1} parent=5 // pred_check
      _
    $region38: #{ngram_forward.1} parent=5 // pred_check_branch
      %193 = sbr.rel (%p190) target = $region40
    $region39: #{ngram_forward.1} parent=5 // pred_region
      %s194 = ssub.s32 %s11, 1
      %s195 = smul.u32 16, %s16
      %p196 = scmp.lt.s32.totalorder %s195, 31
      %s197 = scalar_select %p196, %s195, 31
      %s198 = smul.addr %s197, 2
      %s199 = smul.addr %s198, 4
      %s200 = scalar_lea.vmem %s0, %s199
      %p201 = pneg %p37
      %p202 = pneg %p34
      %p203 = pneg %p58
      %p204 = pneg %p55
      %p205 = pneg %p79
      %p206 = pneg %p76
      %p207 = pneg %p100
      %p208 = pneg %p97
      %p209 = pneg %p121
      %p210 = pneg %p118
      %p211 = pneg %p147
      %p212 = pneg %p144
      %s213 = smul.u32 16, %s16
      %p214 = scmp.lt.s32.totalorder %s213, 31
      %s215 = scalar_select %p214, %s213, 31
      %s216 = smul.addr %s215, 4
      %s217 = scalar_lea.vmem %s5, %s216
      %s218 = smul.u32 16, %s16
      %p219 = scmp.lt.s32.totalorder %s218, 31
      %s220 = scalar_select %p219, %s218, 31
      %s221 = smul.addr %s220, 2
      %s222 = smul.addr %s221, 4
      %s223 = scalar_lea.vmem %s0, %s222
      %s224 = smul.u32 16, %s16
      %s225 = smul.u32 16, %s16
      %p226 = scmp.lt.s32.totalorder %s225, 31
      %s227 = scalar_select %p226, %s225, 31
      %s228 = smul.addr %s227, 4
      %s229 = scalar_lea.vmem %s5, %s228
      %s230 = smul.u32 16, %s16
      %v231 = vld [vmem:[%s223] sm:$0xff]
      %v232 = vld [vmem:[%s223 + $0x8] sm:$0xff]
      %v233 = vld [vmem:[%s223 + $0x10] sm:$0xff]
      %v234 = vld [vmem:[%s223 + $0x18] sm:$0xff]
      %v235 = vld [vmem:[%s223 + $0x20] sm:$0xff]
      %v236 = vld [vmem:[%s223 + $0x28] sm:$0xff]
      %v237 = vld [vmem:[%s223 + $0x30] sm:$0xff]
      %v238 = vld [vmem:[%s223 + $0x38] sm:$0xff]
      %v239 = vld [vmem:[%s223 + $0x40] sm:$0xff]
      %v240 = vld [vmem:[%s223 + $0x48] sm:$0xff]
      %v241 = vld [vmem:[%s223 + $0x50] sm:$0xff]
      %v242 = vld [vmem:[%s223 + $0x58] sm:$0xff]
      %v243 = vld [vmem:[%s223 + $0x60] sm:$0xff]
      %v244 = vld [vmem:[%s223 + $0x68] sm:$0xff]
      %v245 = vld [vmem:[%s223 + $0x70] sm:$0xff]
      %v246 = vld [vmem:[%s223 + $0x78] sm:$0xff]
      %v247 = vld [vmem:[%s1] sm:$0xf]
      %v248 = vld [vmem:[%s1 + $0x4] sm:$0xf]
      %v249 = vld [vmem:[%s1 + $0x8] sm:$0xf]
      %v250 = vld [vmem:[%s1 + $0xc] sm:$0xf]
      %v251 = vld [vmem:[%s1 + $0x10] sm:$0xf]
      %v252 = vld [vmem:[%s1 + $0x14] sm:$0xf]
      %v253 = vld [vmem:[%s1 + $0x18] sm:$0xf]
      %v254 = vld [vmem:[%s1 + $0x1c] sm:$0xf]
      %v255 = vld [vmem:[%s1 + $0x20] sm:$0xf]
      %v256 = vld [vmem:[%s1 + $0x24] sm:$0xf]
      %v257 = vld [vmem:[%s1 + $0x28] sm:$0xf]
      %v258 = vld [vmem:[%s1 + $0x2c] sm:$0xf]
      %v259 = vld [vmem:[%s1 + $0x30] sm:$0xf]
      %v260 = vld [vmem:[%s1 + $0x34] sm:$0xf]
      %v261 = vld [vmem:[%s1 + $0x38] sm:$0xf]
      %v262 = vld [vmem:[%s1 + $0x3c] sm:$0xf]
      %v263 = vld [vmem:[%s1 + $0x40] sm:$0xf]
      %v264 = vld [vmem:[%s1 + $0x44] sm:$0xf]
      %v265 = vld [vmem:[%s1 + $0x48] sm:$0xf]
      %v266 = vld [vmem:[%s1 + $0x4c] sm:$0xf]
      %v267 = vld [vmem:[%s1 + $0x50] sm:$0xf]
      %v268 = vld [vmem:[%s1 + $0x54] sm:$0xf]
      %v269 = vld [vmem:[%s1 + $0x58] sm:$0xf]
      %v270 = vld [vmem:[%s1 + $0x5c] sm:$0xf]
      %v271 = vld [vmem:[%s1 + $0x60] sm:$0xf]
      %v272 = vld [vmem:[%s1 + $0x64] sm:$0xf]
      %v273 = vld [vmem:[%s1 + $0x68] sm:$0xf]
      %v274 = vld [vmem:[%s1 + $0x6c] sm:$0xf]
      %v275 = vld [vmem:[%s1 + $0x70] sm:$0xf]
      %v276 = vld [vmem:[%s1 + $0x74] sm:$0xf]
      %v277 = vld [vmem:[%s1 + $0x78] sm:$0xf]
      %v278 = vld [vmem:[%s1 + $0x7c] sm:$0xf]
      %v279 = vld [vmem:[%s2] sm:$0x1]
      %v281 = vperm.slane %v279, 0
      %v299 = vunpack.c.l.b16 %v231
      %v300 = vunpack.c.h.b16 %v231
      %v301 = vunpack.c.l.b16 %v232
      %v302 = vunpack.c.h.b16 %v232
      %v303 = vunpack.c.l.b16 %v233
      %v304 = vunpack.c.h.b16 %v233
      %v305 = vunpack.c.l.b16 %v234
      %v306 = vunpack.c.h.b16 %v234
      %v307 = vunpack.c.l.b16 %v235
      %v308 = vunpack.c.h.b16 %v235
      %v309 = vunpack.c.l.b16 %v236
      %v310 = vunpack.c.h.b16 %v236
      %v311 = vunpack.c.l.b16 %v237
      %v312 = vunpack.c.h.b16 %v237
      %v313 = vunpack.c.l.b16 %v238
      %v314 = vunpack.c.h.b16 %v238
      %v315 = vunpack.c.l.b16 %v239
      %v316 = vunpack.c.h.b16 %v239
      %v317 = vunpack.c.l.b16 %v240
      %v318 = vunpack.c.h.b16 %v240
      %v319 = vunpack.c.l.b16 %v241
      %v320 = vunpack.c.h.b16 %v241
      %v321 = vunpack.c.l.b16 %v242
      %v322 = vunpack.c.h.b16 %v242
      %v323 = vunpack.c.l.b16 %v243
      %v324 = vunpack.c.h.b16 %v243
      %v325 = vunpack.c.l.b16 %v244
      %v326 = vunpack.c.h.b16 %v244
      %v327 = vunpack.c.l.b16 %v245
      %v328 = vunpack.c.h.b16 %v245
      %v329 = vunpack.c.l.b16 %v246
      %v330 = vunpack.c.h.b16 %v246
      %v331 = vpack.c.b16 %v301, %v299
      %v332 = vpack.c.b16 %v302, %v300
      %v333 = vpack.c.b16 %v305, %v303
      %v334 = vpack.c.b16 %v306, %v304
      %v335 = vpack.c.b16 %v309, %v307
      %v336 = vpack.c.b16 %v310, %v308
      %v337 = vpack.c.b16 %v313, %v311
      %v338 = vpack.c.b16 %v314, %v312
      %v339 = vpack.c.b16 %v317, %v315
      %v340 = vpack.c.b16 %v318, %v316
      %v341 = vpack.c.b16 %v321, %v319
      %v342 = vpack.c.b16 %v322, %v320
      %v343 = vpack.c.b16 %v325, %v323
      %v344 = vpack.c.b16 %v326, %v324
      %v345 = vpack.c.b16 %v329, %v327
      %v346 = vpack.c.b16 %v330, %v328
      %v395 = vunpack.c.l.b16 %v247
      %v396 = vunpack.c.l.b16 %v248
      %v397 = vunpack.c.l.b16 %v249
      %v398 = vunpack.c.l.b16 %v250
      %v399 = vunpack.c.l.b16 %v251
      %v400 = vunpack.c.l.b16 %v252
      %v401 = vunpack.c.l.b16 %v253
      %v402 = vunpack.c.l.b16 %v254
      %v403 = vunpack.c.l.b16 %v255
      %v404 = vunpack.c.l.b16 %v256
      %v405 = vunpack.c.l.b16 %v257
      %v406 = vunpack.c.l.b16 %v258
      %v407 = vunpack.c.l.b16 %v259
      %v408 = vunpack.c.l.b16 %v260
      %v409 = vunpack.c.l.b16 %v261
      %v410 = vunpack.c.l.b16 %v262
      %v411 = vunpack.c.l.b16 %v263
      %v412 = vunpack.c.l.b16 %v264
      %v413 = vunpack.c.l.b16 %v265
      %v414 = vunpack.c.l.b16 %v266
      %v415 = vunpack.c.l.b16 %v267
      %v416 = vunpack.c.l.b16 %v268
      %v417 = vunpack.c.l.b16 %v269
      %v418 = vunpack.c.l.b16 %v270
      %v419 = vunpack.c.l.b16 %v271
      %v420 = vunpack.c.l.b16 %v272
      %v421 = vunpack.c.l.b16 %v273
      %v422 = vunpack.c.l.b16 %v274
      %v423 = vunpack.c.l.b16 %v275
      %v424 = vunpack.c.l.b16 %v276
      %v425 = vunpack.c.l.b16 %v277
      %v426 = vunpack.c.l.b16 %v278
      %v427 = vpack.c.b16 %v396, %v395
      %v428 = vpack.c.b16 %v398, %v397
      %v429 = vpack.c.b16 %v400, %v399
      %v430 = vpack.c.b16 %v402, %v401
      %v431 = vpack.c.b16 %v404, %v403
      %v432 = vpack.c.b16 %v406, %v405
      %v433 = vpack.c.b16 %v408, %v407
      %v434 = vpack.c.b16 %v410, %v409
      %v435 = vpack.c.b16 %v412, %v411
      %v436 = vpack.c.b16 %v414, %v413
      %v437 = vpack.c.b16 %v416, %v415
      %v438 = vpack.c.b16 %v418, %v417
      %v439 = vpack.c.b16 %v420, %v419
      %v440 = vpack.c.b16 %v422, %v421
      %v441 = vpack.c.b16 %v424, %v423
      %v442 = vpack.c.b16 %v426, %v425
      %459 = vmatpush.bf16.msra.mxu0 %v434
      %460 = vmatpush.bf16.msra.mxu0 %v433
      %461 = vmatpush.bf16.msra.mxu0 %v432
      %462 = vmatpush.bf16.msra.mxu0 %v431
      %463 = vmatpush.bf16.msra.mxu0 %v430
      %464 = vmatpush.bf16.msra.mxu0 %v429
      %465 = vmatpush.bf16.msra.mxu0 %v428
      %466 = vmatpush.bf16.msra.mxu0 %v427
      %467 = vmatmul.bf16.gmra.mxu0 %v331
      %v468 = vpop.f32.mrf.mxu0
      %v469 = vadd.f32 %v281, %v468
      %v470 = vpop.f32.mrf.mxu0
      %v471 = vadd.f32 %v281, %v470
      %472 = vmatmul.bf16.gmra.mxu0 %v333
      %v473 = vpop.f32.mrf.mxu0
      %v474 = vadd.f32 %v281, %v473
      %v475 = vpop.f32.mrf.mxu0
      %v476 = vadd.f32 %v281, %v475
      %477 = vmatmul.bf16.gmra.mxu0 %v335
      %v478 = vpop.f32.mrf.mxu0
      %v479 = vadd.f32 %v281, %v478
      %v480 = vpop.f32.mrf.mxu0
      %v481 = vadd.f32 %v281, %v480
      %482 = vmatmul.bf16.gmra.mxu0 %v337
      %v483 = vpop.f32.mrf.mxu0
      %v484 = vadd.f32 %v281, %v483
      %v485 = vpop.f32.mrf.mxu0
      %v486 = vadd.f32 %v281, %v485
      %487 = vmatmul.bf16.gmra.mxu0 %v339
      %v488 = vpop.f32.mrf.mxu0
      %v489 = vadd.f32 %v281, %v488
      %v490 = vpop.f32.mrf.mxu0
      %v491 = vadd.f32 %v281, %v490
      %492 = vmatmul.bf16.gmra.mxu0 %v341
      %v493 = vpop.f32.mrf.mxu0
      %v494 = vadd.f32 %v281, %v493
      %v495 = vpop.f32.mrf.mxu0
      %v496 = vadd.f32 %v281, %v495
      %497 = vmatmul.bf16.gmra.mxu0 %v343
      %v498 = vpop.f32.mrf.mxu0
      %v499 = vadd.f32 %v281, %v498
      %v500 = vpop.f32.mrf.mxu0
      %v501 = vadd.f32 %v281, %v500
      %502 = vmatmul.bf16.gmra.mxu0 %v345
      %v503 = vpop.f32.mrf.mxu0
      %v504 = vadd.f32 %v281, %v503
      %v505 = vpop.f32.mrf.mxu0
      %v506 = vadd.f32 %v281, %v505
      %507 = vdwg.mxu0
      %508 = vmatpush.bf16.msra.mxu0 %v442
      %509 = vmatpush.bf16.msra.mxu0 %v441
      %510 = vmatpush.bf16.msra.mxu0 %v440
      %511 = vmatpush.bf16.msra.mxu0 %v439
      %512 = vmatpush.bf16.msra.mxu0 %v438
      %513 = vmatpush.bf16.msra.mxu0 %v437
      %514 = vmatpush.bf16.msra.mxu0 %v436
      %515 = vmatpush.bf16.msra.mxu0 %v435
      %516 = vmatmul.bf16.gmra.mxu0 %v332
      %v517 = vpop.f32.mrf.mxu0
      %v518 = vadd.f32 %v469, %v517
      %v519 = vpop.f32.mrf.mxu0
      %v520 = vadd.f32 %v471, %v519
      %521 = vmatmul.bf16.gmra.mxu0 %v334
      %v522 = vpop.f32.mrf.mxu0
      %v523 = vadd.f32 %v474, %v522
      %v524 = vpop.f32.mrf.mxu0
      %v525 = vadd.f32 %v476, %v524
      %526 = vmatmul.bf16.gmra.mxu0 %v336
      %v527 = vpop.f32.mrf.mxu0
      %v528 = vadd.f32 %v479, %v527
      %v529 = vpop.f32.mrf.mxu0
      %v530 = vadd.f32 %v481, %v529
      %531 = vmatmul.bf16.gmra.mxu0 %v338
      %v532 = vpop.f32.mrf.mxu0
      %v533 = vadd.f32 %v484, %v532
      %v534 = vpop.f32.mrf.mxu0
      %v535 = vadd.f32 %v486, %v534
      %536 = vmatmul.bf16.gmra.mxu0 %v340
      %v537 = vpop.f32.mrf.mxu0
      %v538 = vadd.f32 %v489, %v537
      %v539 = vpop.f32.mrf.mxu0
      %v540 = vadd.f32 %v491, %v539
      %541 = vmatmul.bf16.gmra.mxu0 %v342
      %v542 = vpop.f32.mrf.mxu0
      %v543 = vadd.f32 %v494, %v542
      %v544 = vpop.f32.mrf.mxu0
      %v545 = vadd.f32 %v496, %v544
      %546 = vmatmul.bf16.gmra.mxu0 %v344
      %v547 = vpop.f32.mrf.mxu0
      %v548 = vadd.f32 %v499, %v547
      %v549 = vpop.f32.mrf.mxu0
      %v550 = vadd.f32 %v501, %v549
      %551 = vmatmul.bf16.gmra.mxu0 %v346
      %v552 = vpop.f32.mrf.mxu0
      %v553 = vadd.f32 %v504, %v552
      %v554 = vpop.f32.mrf.mxu0
      %v555 = vadd.f32 %v506, %v554
      %556 = vdwg.mxu0
      %v557 = vmax.f32 %v518, 0.0
      %v558 = vmax.f32 %v520, 0.0
      %v559 = vmax.f32 %v523, 0.0
      %v560 = vmax.f32 %v525, 0.0
      %v561 = vmax.f32 %v528, 0.0
      %v562 = vmax.f32 %v530, 0.0
      %v563 = vmax.f32 %v533, 0.0
      %v564 = vmax.f32 %v535, 0.0
      %v565 = vmax.f32 %v538, 0.0
      %v566 = vmax.f32 %v540, 0.0
      %v567 = vmax.f32 %v543, 0.0
      %v568 = vmax.f32 %v545, 0.0
      %v569 = vmax.f32 %v548, 0.0
      %v570 = vmax.f32 %v550, 0.0
      %v571 = vmax.f32 %v553, 0.0
      %v572 = vmax.f32 %v555, 0.0
      %v573 = vpack.c.bf16 %v558, %v557
      %v574 = vpack.c.bf16 %v560, %v559
      %v575 = vpack.c.bf16 %v562, %v561
      %v576 = vpack.c.bf16 %v564, %v563
      %v577 = vpack.c.bf16 %v566, %v565
      %v578 = vpack.c.bf16 %v568, %v567
      %v579 = vpack.c.bf16 %v570, %v569
      %v580 = vpack.c.bf16 %v572, %v571
      %v581 = vld [vmem:[%s3] sm:$0xf]
      %v582 = vld [vmem:[%s3 + $0x4] sm:$0xf]
      %v583 = vld [vmem:[%s3 + $0x8] sm:$0xf]
      %v584 = vld [vmem:[%s3 + $0xc] sm:$0xf]
      %v585 = vld [vmem:[%s3 + $0x10] sm:$0xf]
      %v586 = vld [vmem:[%s3 + $0x14] sm:$0xf]
      %v587 = vld [vmem:[%s3 + $0x18] sm:$0xf]
      %v588 = vld [vmem:[%s3 + $0x1c] sm:$0xf]
      %v589 = vld [vmem:[%s3 + $0x20] sm:$0xf]
      %v590 = vld [vmem:[%s3 + $0x24] sm:$0xf]
      %v591 = vld [vmem:[%s3 + $0x28] sm:$0xf]
      %v592 = vld [vmem:[%s3 + $0x2c] sm:$0xf]
      %v593 = vld [vmem:[%s3 + $0x30] sm:$0xf]
      %v594 = vld [vmem:[%s3 + $0x34] sm:$0xf]
      %v595 = vld [vmem:[%s3 + $0x38] sm:$0xf]
      %v596 = vld [vmem:[%s3 + $0x3c] sm:$0xf]
      %v597 = vld [vmem:[%s4] sm:$0x1]
      %v599 = vperm.slane %v597, 0
      %v617 = vunpack.c.l.b16 %v581
      %v618 = vunpack.c.l.b16 %v582
      %v619 = vunpack.c.l.b16 %v583
      %v620 = vunpack.c.l.b16 %v584
      %v621 = vunpack.c.l.b16 %v585
      %v622 = vunpack.c.l.b16 %v586
      %v623 = vunpack.c.l.b16 %v587
      %v624 = vunpack.c.l.b16 %v588
      %v625 = vunpack.c.l.b16 %v589
      %v626 = vunpack.c.l.b16 %v590
      %v627 = vunpack.c.l.b16 %v591
      %v628 = vunpack.c.l.b16 %v592
      %v629 = vunpack.c.l.b16 %v593
      %v630 = vunpack.c.l.b16 %v594
      %v631 = vunpack.c.l.b16 %v595
      %v632 = vunpack.c.l.b16 %v596
      %v633 = vpack.c.b16 %v618, %v617
      %v634 = vpack.c.b16 %v620, %v619
      %v635 = vpack.c.b16 %v622, %v621
      %v636 = vpack.c.b16 %v624, %v623
      %v637 = vpack.c.b16 %v626, %v625
      %v638 = vpack.c.b16 %v628, %v627
      %v639 = vpack.c.b16 %v630, %v629
      %v640 = vpack.c.b16 %v632, %v631
      %649 = vmatpush.bf16.msra.mxu0 %v640
      %650 = vmatpush.bf16.msra.mxu0 %v639
      %651 = vmatpush.bf16.msra.mxu0 %v638
      %652 = vmatpush.bf16.msra.mxu0 %v637
      %653 = vmatpush.bf16.msra.mxu0 %v636
      %654 = vmatpush.bf16.msra.mxu0 %v635
      %655 = vmatpush.bf16.msra.mxu0 %v634
      %656 = vmatpush.bf16.msra.mxu0 %v633
      %657 = vmatmul.bf16.gmra.mxu0 %v573
      %v658 = vpop.f32.mrf.mxu0
      %v659 = vadd.f32 %v599, %v658
      %v660 = vpop.f32.mrf.mxu0
      %v661 = vadd.f32 %v599, %v660
      %662 = vmatmul.bf16.gmra.mxu0 %v574
      %v663 = vpop.f32.mrf.mxu0
      %v664 = vadd.f32 %v599, %v663
      %v665 = vpop.f32.mrf.mxu0
      %v666 = vadd.f32 %v599, %v665
      %667 = vmatmul.bf16.gmra.mxu0 %v575
      %v668 = vpop.f32.mrf.mxu0
      %v669 = vadd.f32 %v599, %v668
      %v670 = vpop.f32.mrf.mxu0
      %v671 = vadd.f32 %v599, %v670
      %672 = vmatmul.bf16.gmra.mxu0 %v576
      %v673 = vpop.f32.mrf.mxu0
      %v674 = vadd.f32 %v599, %v673
      %v675 = vpop.f32.mrf.mxu0
      %v676 = vadd.f32 %v599, %v675
      %677 = vmatmul.bf16.gmra.mxu0 %v577
      %v678 = vpop.f32.mrf.mxu0
      %v679 = vadd.f32 %v599, %v678
      %v680 = vpop.f32.mrf.mxu0
      %v681 = vadd.f32 %v599, %v680
      %682 = vmatmul.bf16.gmra.mxu0 %v578
      %v683 = vpop.f32.mrf.mxu0
      %v684 = vadd.f32 %v599, %v683
      %v685 = vpop.f32.mrf.mxu0
      %v686 = vadd.f32 %v599, %v685
      %687 = vmatmul.bf16.gmra.mxu0 %v579
      %v688 = vpop.f32.mrf.mxu0
      %v689 = vadd.f32 %v599, %v688
      %v690 = vpop.f32.mrf.mxu0
      %v691 = vadd.f32 %v599, %v690
      %692 = vmatmul.bf16.gmra.mxu0 %v580
      %v693 = vpop.f32.mrf.mxu0
      %v694 = vadd.f32 %v599, %v693
      %v695 = vpop.f32.mrf.mxu0
      %v696 = vadd.f32 %v599, %v695
      %697 = vdwg.mxu0
      %698 = vmax.xlane.f32.xlu0 %v659
      %v699 = vpop.xlane.xlu0 %698
      %700 = vmax.xlane.f32.xlu0 %v661
      %v701 = vpop.xlane.xlu0 %700
      %702 = vmax.xlane.f32.xlu0 %v664
      %v703 = vpop.xlane.xlu0 %702
      %704 = vmax.xlane.f32.xlu0 %v666
      %v705 = vpop.xlane.xlu0 %704
      %706 = vmax.xlane.f32.xlu0 %v669
      %v707 = vpop.xlane.xlu0 %706
      %708 = vmax.xlane.f32.xlu0 %v671
      %v709 = vpop.xlane.xlu0 %708
      %710 = vmax.xlane.f32.xlu0 %v674
      %v711 = vpop.xlane.xlu0 %710
      %712 = vmax.xlane.f32.xlu0 %v676
      %v713 = vpop.xlane.xlu0 %712
      %714 = vmax.xlane.f32.xlu0 %v679
      %v715 = vpop.xlane.xlu0 %714
      %716 = vmax.xlane.f32.xlu0 %v681
      %v717 = vpop.xlane.xlu0 %716
      %718 = vmax.xlane.f32.xlu0 %v684
      %v719 = vpop.xlane.xlu0 %718
      %720 = vmax.xlane.f32.xlu0 %v686
      %v721 = vpop.xlane.xlu0 %720
      %722 = vmax.xlane.f32.xlu0 %v689
      %v723 = vpop.xlane.xlu0 %722
      %724 = vmax.xlane.f32.xlu0 %v691
      %v725 = vpop.xlane.xlu0 %724
      %726 = vmax.xlane.f32.xlu0 %v694
      %v727 = vpop.xlane.xlu0 %726
      %728 = vmax.xlane.f32.xlu0 %v696
      %v729 = vpop.xlane.xlu0 %728
      %v730 = vsub.f32 %v659, %v699
      %v731 = vsub.f32 %v661, %v701
      %v732 = vsub.f32 %v664, %v703
      %v733 = vsub.f32 %v666, %v705
      %v734 = vsub.f32 %v669, %v707
      %v735 = vsub.f32 %v671, %v709
      %v736 = vsub.f32 %v674, %v711
      %v737 = vsub.f32 %v676, %v713
      %v738 = vsub.f32 %v679, %v715
      %v739 = vsub.f32 %v681, %v717
      %v740 = vsub.f32 %v684, %v719
      %v741 = vsub.f32 %v686, %v721
      %v742 = vsub.f32 %v689, %v723
      %v743 = vsub.f32 %v691, %v725
      %v744 = vsub.f32 %v694, %v727
      %v745 = vsub.f32 %v696, %v729
      %v746 = vmul.f32 %v730, 1.442695
      %v747 = vpow.pop %v746
      %v748 = vmul.f32 %v731, 1.442695
      %v749 = vpow.pop %v748
      %v750 = vmul.f32 %v732, 1.442695
      %v751 = vpow.pop %v750
      %v752 = vmul.f32 %v733, 1.442695
      %v753 = vpow.pop %v752
      %v754 = vmul.f32 %v734, 1.442695
      %v755 = vpow.pop %v754
      %v756 = vmul.f32 %v735, 1.442695
      %v757 = vpow.pop %v756
      %v758 = vmul.f32 %v736, 1.442695
      %v759 = vpow.pop %v758
      %v760 = vmul.f32 %v737, 1.442695
      %v761 = vpow.pop %v760
      %v762 = vmul.f32 %v738, 1.442695
      %v763 = vpow.pop %v762
      %v764 = vmul.f32 %v739, 1.442695
      %v765 = vpow.pop %v764
      %v766 = vmul.f32 %v740, 1.442695
      %v767 = vpow.pop %v766
      %v768 = vmul.f32 %v741, 1.442695
      %v769 = vpow.pop %v768
      %v770 = vmul.f32 %v742, 1.442695
      %v771 = vpow.pop %v770
      %v772 = vmul.f32 %v743, 1.442695
      %v773 = vpow.pop %v772
      %v774 = vmul.f32 %v744, 1.442695
      %v775 = vpow.pop %v774
      %v776 = vmul.f32 %v745, 1.442695
      %v777 = vpow.pop %v776
      %778 = vadd.xlane.f32.xlu0 %v747
      %v779 = vpop.xlane.xlu0 %778
      %780 = vadd.xlane.f32.xlu0 %v749
      %v781 = vpop.xlane.xlu0 %780
      %782 = vadd.xlane.f32.xlu0 %v751
      %v783 = vpop.xlane.xlu0 %782
      %784 = vadd.xlane.f32.xlu0 %v753
      %v785 = vpop.xlane.xlu0 %784
      %786 = vadd.xlane.f32.xlu0 %v755
      %v787 = vpop.xlane.xlu0 %786
      %788 = vadd.xlane.f32.xlu0 %v757
      %v789 = vpop.xlane.xlu0 %788
      %790 = vadd.xlane.f32.xlu0 %v759
      %v791 = vpop.xlane.xlu0 %790
      %792 = vadd.xlane.f32.xlu0 %v761
      %v793 = vpop.xlane.xlu0 %792
      %794 = vadd.xlane.f32.xlu0 %v763
      %v795 = vpop.xlane.xlu0 %794
      %796 = vadd.xlane.f32.xlu0 %v765
      %v797 = vpop.xlane.xlu0 %796
      %798 = vadd.xlane.f32.xlu0 %v767
      %v799 = vpop.xlane.xlu0 %798
      %800 = vadd.xlane.f32.xlu0 %v769
      %v801 = vpop.xlane.xlu0 %800
      %802 = vadd.xlane.f32.xlu0 %v771
      %v803 = vpop.xlane.xlu0 %802
      %804 = vadd.xlane.f32.xlu0 %v773
      %v805 = vpop.xlane.xlu0 %804
      %806 = vadd.xlane.f32.xlu0 %v775
      %v807 = vpop.xlane.xlu0 %806
      %808 = vadd.xlane.f32.xlu0 %v777
      %v809 = vpop.xlane.xlu0 %808
      %v810 = vlog2.pop %v779
      %v811 = vmul.f32 %v810, 0.6931472
      %v812 = vlog2.pop %v781
      %v813 = vmul.f32 %v812, 0.6931472
      %v814 = vlog2.pop %v783
      %v815 = vmul.f32 %v814, 0.6931472
      %v816 = vlog2.pop %v785
      %v817 = vmul.f32 %v816, 0.6931472
      %v818 = vlog2.pop %v787
      %v819 = vmul.f32 %v818, 0.6931472
      %v820 = vlog2.pop %v789
      %v821 = vmul.f32 %v820, 0.6931472
      %v822 = vlog2.pop %v791
      %v823 = vmul.f32 %v822, 0.6931472
      %v824 = vlog2.pop %v793
      %v825 = vmul.f32 %v824, 0.6931472
      %v826 = vlog2.pop %v795
      %v827 = vmul.f32 %v826, 0.6931472
      %v828 = vlog2.pop %v797
      %v829 = vmul.f32 %v828, 0.6931472
      %v830 = vlog2.pop %v799
      %v831 = vmul.f32 %v830, 0.6931472
      %v832 = vlog2.pop %v801
      %v833 = vmul.f32 %v832, 0.6931472
      %v834 = vlog2.pop %v803
      %v835 = vmul.f32 %v834, 0.6931472
      %v836 = vlog2.pop %v805
      %v837 = vmul.f32 %v836, 0.6931472
      %v838 = vlog2.pop %v807
      %v839 = vmul.f32 %v838, 0.6931472
      %v840 = vlog2.pop %v809
      %v841 = vmul.f32 %v840, 0.6931472
      %v842 = vsub.f32 %v730, %v811
      %v843 = vsub.f32 %v731, %v813
      %v844 = vsub.f32 %v732, %v815
      %v845 = vsub.f32 %v733, %v817
      %v846 = vsub.f32 %v734, %v819
      %v847 = vsub.f32 %v735, %v821
      %v848 = vsub.f32 %v736, %v823
      %v849 = vsub.f32 %v737, %v825
      %v850 = vsub.f32 %v738, %v827
      %v851 = vsub.f32 %v739, %v829
      %v852 = vsub.f32 %v740, %v831
      %v853 = vsub.f32 %v741, %v833
      %v854 = vsub.f32 %v742, %v835
      %v855 = vsub.f32 %v743, %v837
      %v856 = vsub.f32 %v744, %v839
      %v857 = vsub.f32 %v745, %v841
      %v858 = vpack.c.bf16 %v842, %v842
      %v859 = vpack.c.bf16 %v843, %v843
      %v860 = vpack.c.bf16 %v844, %v844
      %v861 = vpack.c.bf16 %v845, %v845
      %v862 = vpack.c.bf16 %v846, %v846
      %v863 = vpack.c.bf16 %v847, %v847
      %v864 = vpack.c.bf16 %v848, %v848
      %v865 = vpack.c.bf16 %v849, %v849
      %v866 = vpack.c.bf16 %v850, %v850
      %v867 = vpack.c.bf16 %v851, %v851
      %v868 = vpack.c.bf16 %v852, %v852
      %v869 = vpack.c.bf16 %v853, %v853
      %v870 = vpack.c.bf16 %v854, %v854
      %v871 = vpack.c.bf16 %v855, %v855
      %v872 = vpack.c.bf16 %v856, %v856
      %v873 = vpack.c.bf16 %v857, %v857
      %874 = vst [vmem:[%s229] sm:$0xf] %v858
      %875 = vst [vmem:[%s229 + $0x4] sm:$0xf] %v859
      %876 = vst [vmem:[%s229 + $0x8] sm:$0xf] %v860
      %877 = vst [vmem:[%s229 + $0xc] sm:$0xf] %v861
      %878 = vst [vmem:[%s229 + $0x10] sm:$0xf] %v862
      %879 = vst [vmem:[%s229 + $0x14] sm:$0xf] %v863
      %880 = vst [vmem:[%s229 + $0x18] sm:$0xf] %v864
      %881 = vst [vmem:[%s229 + $0x1c] sm:$0xf] %v865
      %882 = vst [vmem:[%s229 + $0x20] sm:$0xf] %v866
      %883 = vst [vmem:[%s229 + $0x24] sm:$0xf] %v867
      %884 = vst [vmem:[%s229 + $0x28] sm:$0xf] %v868
      %885 = vst [vmem:[%s229 + $0x2c] sm:$0xf] %v869
      %886 = vst [vmem:[%s229 + $0x30] sm:$0xf] %v870
      %887 = vst [vmem:[%s229 + $0x34] sm:$0xf] %v871
      %888 = vst [vmem:[%s229 + $0x38] sm:$0xf] %v872
      %889 = vst [vmem:[%s229 + $0x3c] sm:$0xf] %v873
      %s890 = smul.u32 16, %s16
      %p891 = scmp.lt.s32.totalorder %s890, 31
      %s892 = scalar_select %p891, %s890, 31
      %s893 = smul.addr %s892, 4
      %s894 = scalar_lea.vmem %s5, %s893
      // Predicated region
      $region41: #{ngram_forward.1} parent=39 // pred_check
        %p895 = pneg %p144
      $region42: #{ngram_forward.1} parent=39 // pred_check_branch
        %897 = sbr.rel (%p895) target = $region44
      $region43: #{ngram_forward.1} parent=39 // pred_region
        %s898 = smul.u32 16, %s16
      $region44: #{ngram_forward.1} parent=39 // pred_fallthru
        _
    $region40: #{ngram_forward.1} parent=5 // pred_fallthru
      _
    %p899 = scmp.le.s32.totalorder 2, %s11
    // Predicated region
    $region45: #{ngram_forward.1} parent=5 // pred_check
      %p900 = pneg %p899
    $region46: #{ngram_forward.1} parent=5 // pred_check_branch
      %902 = sbr.rel (%p900) target = $region48
    $region47: #{ngram_forward.1} parent=5 // pred_region
      %s903 = ssub.s32 %s11, 2
      // Predicated region
      $region49: #{ngram_forward.1} parent=47 // pred_check
        %p904 = pneg %p150
      $region50: #{ngram_forward.1} parent=47 // pred_check_branch
        %906 = sbr.rel (%p904) target = $region52
      $region51: #{ngram_forward.1} parent=47 // pred_region
        %s907 = smul.u32 16, %s17
        %p908 = scmp.lt.s32.totalorder %s907, 31
        %s909 = scalar_select %p908, %s907, 31
        %s910 = smul.addr %s909, 4
        %s911 = scalar_lea.vmem %s5, %s910
      $region52: #{ngram_forward.1} parent=47 // pred_fallthru
        _
    $region48: #{ngram_forward.1} parent=5 // pred_fallthru
      _
  $region6: #{ngram_forward.1} parent=0 // loop_footer
    %s15 = sadd.s32 1, %s11
  $region7: #{ngram_forward.1} parent=0 // loop_footer_branch
    %10 = sbr.rel target = $region3
  $region8: #{ngram_forward.1} parent=0 // loop_exit
    _

</llo_original>
